<compile_context>
chip_gen: v7x
topology: tpu7x:2x2x1
jax: 0.10.0
libtpu: 0.0.40
codegen_flags: <defaults>
</compile_context>

<pallas_src>
import functools

import jax
import jax.numpy as jnp
import numpy as np
from jax.experimental import pallas as pl
from jax.experimental.pallas import tpu as pltpu


# ----------------------------- kernel helpers ------------------------------

def _finalize_softmax(out_ref, S):
    """Softmax over S on the last S step.

    out_ref block: (n_s, tB, tS) f32, resident across the S grid axis.  Element
    [k, b, t] holds the raw score of sequence position s = k*tS + t.
    """
    @pl.when(pl.program_id(1) == pl.num_programs(1) - 1)
    def _():
        n_s, _, tS = out_ref.shape
        sc = out_ref[...]                                          # (n_s, tB, tS)
        if n_s * tS != S:                                          # static check
            blk = jax.lax.broadcasted_iota(jnp.int32, sc.shape, 0)
            ln = jax.lax.broadcasted_iota(jnp.int32, sc.shape, 2)
            sc = jnp.where(blk * tS + ln < S, sc, -jnp.inf)        # mask padded tail
        m = jnp.max(jnp.max(sc, axis=2, keepdims=True), axis=0, keepdims=True)
        e = jnp.exp(sc - m)
        denom = jnp.sum(jnp.sum(e, axis=2, keepdims=True), axis=0, keepdims=True)
        # Exact division: once per B block and off the critical path; keeps the
        # output rows summing to exactly 1 for downstream consumers.
        out_ref[...] = (e / denom).astype(out_ref.dtype)


# ------------------------------- kernels -----------------------------------

def dot_kernel(g_ref, enc_ref, out_ref, *, S):
    # g:   (tB, H) f32   ('dot': hidden; 'general': hidden @ W, folded in wrapper)
    # enc: (tS, tB, H) bf16/f32; dtype promotion keeps the multiply/accumulate f32.
    j = pl.program_id(1)
    block = jnp.sum(enc_ref[...] * g_ref[...][None, :, :], axis=-1)    # (tS, tB) f32
    out_ref[j] = jnp.transpose(block, (1, 0))                          # lane-dense (tB, tS)
    _finalize_softmax(out_ref, S)


def concat_kernel(hwb_ref, wet_ref, v_ref, enc_ref, out_ref, *, S):
    # energy = tanh([h; enc] @ W.T + b) = tanh((h @ Wh.T + b) + enc @ We.T)
    # hwb = h @ Wh.T + b is hoisted to the wrapper (constant over S).
    j = pl.program_id(1)
    tS, tB, H = enc_ref.shape
    e = jnp.dot(enc_ref[...].reshape(tS * tB, H), wet_ref[...],
                preferred_element_type=jnp.float32).reshape(tS, tB, H)
    # TODO(synk): on v6e/v7x, casting (e + hwb) to bfloat16 before tanh roughly
    # halves EUP time; kept in f32 here so the same kernel is safe on v5e.
    energy = jnp.tanh(e + hwb_ref[...][None, :, :])
    block = jnp.sum(energy * v_ref[...][None, :, :], axis=-1)          # (tS, tB)
    out_ref[j] = jnp.transpose(block, (1, 0))
    _finalize_softmax(out_ref, S)


# ---------------------------- sizing heuristics -----------------------------

def _vmem_budget_bytes():
    cap = 64 * 1024 * 1024                      # conservative default (v7x per-core)
    try:
        cap = int(getattr(pltpu.get_tpu_info(), "vmem_capacity_bytes", cap))
    except Exception:
        pass
    # ~48 MiB usable on v7x (64 MiB physical), ~96 MiB on v5e/v6e (128 MiB).
    return int(min(96 * 1024 * 1024, (cap * 3) // 4))


def _choose_tiles(method, S, B, H, enc_itemsize, budget, ts_max, tb_max):
    # Batch tile: pad B to a multiple of the 8-sublane quantum (never fall back
    # to tB=B for awkward B); keep >= 2 B blocks when B allows so the
    # "parallel" grid axis can shard across both v7x TensorCores.
    B8 = ((B + 7) // 8) * 8
    tB = min(tb_max, B8)
    if B8 >= 16:
        tB = min(tB, B8 // 2)
    tB = max(8, (tB // 8) * 8)
    B_pad = ((B8 + tB - 1) // tB) * tB

    # Seq tile: largest tile whose double-buffered enc block plus in-kernel f32
    # temporaries stay inside ~3/4 of the VMEM budget.
    per_row = tB * H * (2 * enc_itemsize + (24 if method == 'concat' else 16))
    cap = max(8, (budget * 3 // 4) // max(per_row, 1))
    if ts_max is not None:
        cap = min(cap, int(ts_max))
    cap = min(cap, 2048)
    if S <= cap:
        tS = max(8, ((S + 7) // 8) * 8)
    elif cap >= 128:
        tS = (cap // 128) * 128                 # lane-aligned output slabs
    else:
        tS = max(8, (cap // 8) * 8)
    S_pad = ((S + tS - 1) // tS) * tS
    return tB, B_pad, tS, S_pad


def _vmem_limit_bytes(method, tS, tB, H, n_s, enc_itemsize, budget):
    lane = lambda n: ((n + 127) // 128) * 128
    Hl = lane(H)
    need = 2 * tS * tB * Hl * enc_itemsize                     # enc, double-buffered
    need += 2 * n_s * tB * lane(tS) * 4                        # resident out block
    need += 2 * tB * Hl * 4                                    # g / hwb
    need += tS * tB * Hl * (24 if method == 'concat' else 16)  # in-kernel f32 temps
    if method == 'concat':
        # We / v constants (small after bf16 cast; default double-buffering is
        # accepted rather than risking pipeline_mode=pl.Buffered(1)).
        need += 2 * (H * Hl * enc_itemsize + Hl * 4)
    need = int(need * 1.15) + (2 << 20)
    return int(min(budget, max(need, 24 << 20)))


# ------------------------------- wrapper ------------------------------------

def attn_forward(method, hidden, encoder_outputs, params, *,
                 enc_dtype=jnp.bfloat16, ts_max=None, tb_max=16):
    """Replicates Attn(method, H).forward(hidden, encoder_outputs).

    hidden:          (1, B, H) float32
    encoder_outputs: (S, B, H) float32
    returns:         (B, 1, S) float32

    enc_dtype: storage dtype of the streamed encoder tensor inside the kernel
      (accumulation stays f32).  bfloat16 halves HBM traffic of the
      memory-bound dot/general scores at a small precision cost; pass
      jnp.float32 for bit-accurate scores.
    """
    S, B, H = encoder_outputs.shape
    budget = _vmem_budget_bytes()
    enc_itemsize = np.dtype(enc_dtype).itemsize
    tB, B_pad, tS, S_pad = _choose_tiles(method, S, B, H, enc_itemsize,
                                         budget, ts_max, tb_max)
    n_b, n_s = B_pad // tB, S_pad // tS

    h2 = hidden[0].astype(jnp.float32)                         # (B, H), cheap view
    enc = encoder_outputs.astype(enc_dtype)
    if (S_pad, B_pad) != (S, B):
        enc = jnp.pad(enc, ((0, S_pad - S), (0, B_pad - B), (0, 0)))

    def pad_b(x):
        return jnp.pad(x, ((0, B_pad - B), (0, 0))) if B_pad != B else x

    enc_spec = pl.BlockSpec((tS, tB, H), lambda i, j: (j, i, 0))
    vec_spec = pl.BlockSpec((tB, H), lambda i, j: (i, 0))
    out_spec = pl.BlockSpec((n_s, tB, tS), lambda i, j: (0, i, 0))
    const2d = lambda shape: pl.BlockSpec(shape, lambda i, j: (0, 0))

    if method == 'dot':
        kern = functools.partial(dot_kernel, S=S)
        args = (pad_b(h2), enc)
        in_specs = [vec_spec, enc_spec]
    elif method == 'general':
        # Fold:  sum_h h*(enc @ W.T + b) = enc . (h @ W) + h.b ; the h.b term is
        # constant over S, hence softmax-invariant, and is dropped.  NOTE: this
        # is only valid for a per-feature bias (true for nn.Linear).
        g = h2 @ params['W'].astype(jnp.float32)               # tiny (B,H)@(H,H) in XLA
        kern = functools.partial(dot_kernel, S=S)
        args = (pad_b(g), enc)
        in_specs = [vec_spec, enc_spec]
    elif method == 'concat':
        W = params['W']                                        # (H, 2H) = [Wh | We]
        hwb = h2 @ W[:, :H].T.astype(jnp.float32) + params['b']   # hoisted (B, H)
        wet = W[:, H:].T.astype(enc_dtype)                     # (H, H), feeds the MXU
        v = params['v'].reshape(1, H).astype(jnp.float32)
        kern = functools.partial(concat_kernel, S=S)
        args = (pad_b(hwb), wet, v, enc)
        in_specs = [vec_spec, const2d((H, H)), const2d((1, H)), enc_spec]
    else:
        raise ValueError(method, 'is not an appropriate attention method')

    out = pl.pallas_call(
        kern,
        out_shape=jax.ShapeDtypeStruct((n_s, B_pad, tS), jnp.float32),
        grid=(n_b, n_s),
        in_specs=in_specs,
        out_specs=out_spec,
        compiler_params=pltpu.CompilerParams(
            dimension_semantics=("parallel", "arbitrary"),
            vmem_limit_bytes=_vmem_limit_bytes(method, tS, tB, H, n_s,
                                               enc_itemsize, budget)),
    )(*args)

    # (n_s, B_pad, tS) -> (B, 1, S): tiny output-slab plumbing in XLA (the
    # output is <1% of the encoder bytes).
    out = out.transpose(1, 0, 2).reshape(B_pad, S_pad)
    return out[:B, :S][:, None, :]


# ---------------------------- pure-JAX reference ----------------------------

def attn_reference(method, hidden, encoder_outputs, params):
    hidden = hidden.astype(jnp.float32)
    enc = encoder_outputs.astype(jnp.float32)
    if method == 'dot':
        scores = jnp.sum(hidden * enc, axis=2)                          # (S, B)
    elif method == 'general':
        energy = enc @ params['W'].T + params['b']
        scores = jnp.sum(hidden * energy, axis=2)
    else:  # concat
        hexp = jnp.broadcast_to(hidden, enc.shape)
        cat = jnp.concatenate([hexp, enc], axis=2)
        energy = jnp.tanh(cat @ params['W'].T + params['b'])
        scores = jnp.sum(params['v'] * energy, axis=2)
    return jax.nn.softmax(scores.T, axis=1)[:, None, :]                 # (B, 1, S)


# --------------------------------- main --------------------------------------

if __name__ == "__main__":
    # Small demo shapes (module default hidden_size=500 scaled down).
    # S=12 with ts_max=8 exercises multi-block S + padded-tail masking;
    # B=2 exercises batch padding to the 8-sublane quantum.
    B, S, H = 2, 12, 32
    TS = 8

    key = jax.random.PRNGKey(0)
    k_h, k_e, k_wg, k_bg, k_wc, k_bc, k_v = jax.random.split(key, 7)

    hidden = jax.random.normal(k_h, (1, B, H), dtype=jnp.float32)
    encoder_outputs = jax.random.normal(k_e, (S, B, H), dtype=jnp.float32)

    bg = 1.0 / np.sqrt(H)
    params_general = {
        'W': jax.random.uniform(k_wg, (H, H), jnp.float32, -bg, bg),
        'b': jax.random.uniform(k_bg, (H,), jnp.float32, -bg, bg),
    }
    bc = 1.0 / np.sqrt(2 * H)
    params_concat = {
        'W': jax.random.uniform(k_wc, (H, 2 * H), jnp.float32, -bc, bc),
        'b': jax.random.uniform(k_bc, (H,), jnp.float32, -bc, bc),
        'v': jax.random.normal(k_v, (H,), dtype=jnp.float32) * 0.1,
    }

    cases = [('dot', {}), ('general', params_general), ('concat', params_concat)]

    for method, params in cases:
        out = attn_forward(method, hidden, encoder_outputs, params, ts_max=TS)
        out = jax.block_until_ready(out)
        out_np = np.asarray(out)
        assert out_np.shape == (B, 1, S), (method, out_np.shape)

        # Exact reciprocal in the finalize -> rows sum to 1.
        assert np.allclose(out_np.sum(-1), 1.0, atol=1e-5), method

        # Tight check against a reference fed the same bf16-cast tensors the
        # kernel streams (isolates kernel math from the bf16-encoder trade-off).
        enc_eff = encoder_outputs.astype(jnp.bfloat16).astype(jnp.float32)
        params_eff = dict(params)
        if method == 'concat':
            W = params['W']
            params_eff['W'] = jnp.concatenate(
                [W[:, :H], W[:, H:].astype(jnp.bfloat16).astype(jnp.float32)],
                axis=1)
        ref_eff = np.asarray(attn_reference(method, hidden, enc_eff, params_eff))
        assert np.allclose(out_np, ref_eff, atol=3e-3, rtol=3e-3), method

        # Loose sanity check against the full-f32 reference (documents the
        # intended bf16-encoder precision trade-off).
        ref_f32 = np.asarray(attn_reference(method, hidden, encoder_outputs, params))
        assert np.allclose(out_np, ref_f32, atol=8e-2, rtol=8e-2), method

    # Bit-accurate path: stream the encoder in f32 (single-S-block fast path)
    # and check tightly against the f32 reference.
    out32 = jax.block_until_ready(
        attn_forward('dot', hidden, encoder_outputs, {}, enc_dtype=jnp.float32))
    ref32 = np.asarray(attn_reference('dot', hidden, encoder_outputs, {}))
    assert np.allclose(np.asarray(out32), ref32, atol=3e-3, rtol=3e-3)

    print("KERNEL_OK")
</pallas_src>

<mosaic_0001>
module attributes {stable_mosaic.version = 11 : i64} {
  func.func @dot_kernel(%arg0: i32, %arg1: i32, %arg2: memref<8x32xf32, #tpu.memory_space<vmem>>, %arg3: memref<8x8x32xbf16, #tpu.memory_space<vmem>>, %arg4: memref<2x8x8xf32, #tpu.memory_space<vmem>>) attributes {dimension_semantics = [#tpu.dimension_semantics<parallel>, #tpu.dimension_semantics<arbitrary>], iteration_bounds = array<i64: 1, 2>, scalar_prefetch = 0 : i64, scratch_operands = 0 : i64, tpu.core_type = #tpu.core_type<tc>, window_params = [{transform_indices = @transform_0, window_bounds = array<i64: 8, 32>}, {transform_indices = @transform_1, window_bounds = array<i64: 8, 8, 32>}, {transform_indices = @transform_2, window_bounds = array<i64: 2, 8, 8>}]} {
    %c0 = arith.constant 0 : index
    %c0_0 = arith.constant 0 : index
    %c0_1 = arith.constant 0 : index
    %0 = vector.load %arg3[%c0, %c0_0, %c0_1] : memref<8x8x32xbf16, #tpu.memory_space<vmem>>, vector<8x8x32xbf16>
    %c0_2 = arith.constant 0 : index
    %c0_3 = arith.constant 0 : index
    %1 = vector.load %arg2[%c0_2, %c0_3] : memref<8x32xf32, #tpu.memory_space<vmem>>, vector<8x32xf32>
    %2 = vector.shape_cast %1 : vector<8x32xf32> to vector<1x8x32xf32>
    %3 = arith.extf %0 : vector<8x8x32xbf16> to vector<8x8x32xf32>
    %4 = vector.broadcast %2 : vector<1x8x32xf32> to vector<8x8x32xf32>
    %5 = arith.mulf %3, %4 : vector<8x8x32xf32>
    %cst = arith.constant dense<0.000000e+00> : vector<8x8xf32>
    %6 = vector.multi_reduction <add>, %5, %cst [2] : vector<8x8x32xf32> to vector<8x8xf32>
    %7 = tpu.transpose %6, [1, 0] : vector<8x8xf32> -> vector<8x8xf32>
    %8 = arith.index_cast %arg1 : i32 to index
    %c0_4 = arith.constant 0 : index
    %c0_5 = arith.constant 0 : index
    %9 = vector.load %arg4[%8, %c0_4, %c0_5] : memref<2x8x8xf32, #tpu.memory_space<vmem>>, vector<1x8x8xf32>
    %10 = vector.shape_cast %9 : vector<1x8x8xf32> to vector<8x8xf32>
    %11 = vector.shape_cast %7 : vector<8x8xf32> to vector<1x8x8xf32>
    tpu.vector_store %arg4[%8, %c0_4, %c0_5], %11 {strides = array<i32>} : memref<2x8x8xf32, #tpu.memory_space<vmem>>, vector<1x8x8xf32>,
    %c1_i32 = arith.constant 1 : i32
    %12 = arith.cmpi eq, %arg1, %c1_i32 : i32
    %13 = arith.extui %12 : i1 to i32
    %c0_i32 = arith.constant 0 : i32
    %14 = arith.cmpi ne, %13, %c0_i32 : i32
    scf.if %14 {
      %c0_6 = arith.constant 0 : index
      %c0_7 = arith.constant 0 : index
      %c0_8 = arith.constant 0 : index
      %15 = vector.load %arg4[%c0_6, %c0_7, %c0_8] : memref<2x8x8xf32, #tpu.memory_space<vmem>>, vector<2x8x8xf32>
      %16 = tpu.iota {dimensions = array<i32: 0>} : vector<2x8x8xi32>
      %17 = tpu.iota {dimensions = array<i32: 2>} : vector<2x8x8xi32>
      %c8_i32 = arith.constant 8 : i32
      %18 = vector.broadcast %c8_i32 : i32 to vector<2x8x8xi32>
      %19 = arith.muli %16, %18 : vector<2x8x8xi32>
      %20 = arith.addi %19, %17 : vector<2x8x8xi32>
      %c12_i32 = arith.constant 12 : i32
      %21 = vector.broadcast %c12_i32 : i32 to vector<2x8x8xi32>
      %22 = arith.cmpi slt, %20, %21 : vector<2x8x8xi32>
      %cst_9 = arith.constant 0xFF800000 : f32
      %23 = vector.broadcast %cst_9 : f32 to vector<2x8x8xf32>
      %24 = arith.select %22, %15, %23 : vector<2x8x8xi1>, vector<2x8x8xf32>
      %cst_10 = arith.constant dense<0xFF800000> : vector<2x8xf32>
      %25 = vector.multi_reduction <maximumf>, %24, %cst_10 [2] : vector<2x8x8xf32> to vector<2x8xf32>
      %26 = vector.shape_cast %25 : vector<2x8xf32> to vector<2x8x1xf32>
      %cst_11 = arith.constant dense<0xFF800000> : vector<8x1xf32>
      %27 = vector.multi_reduction <maximumf>, %26, %cst_11 [0] : vector<2x8x1xf32> to vector<8x1xf32>
      %28 = vector.shape_cast %27 : vector<8x1xf32> to vector<1x8x1xf32>
      %29 = vector.broadcast %28 : vector<1x8x1xf32> to vector<2x8x8xf32>
      %30 = arith.subf %24, %29 : vector<2x8x8xf32>
      %31 = math.exp %30 : vector<2x8x8xf32>
      %cst_12 = arith.constant dense<0.000000e+00> : vector<2x8xf32>
      %32 = vector.multi_reduction <add>, %31, %cst_12 [2] : vector<2x8x8xf32> to vector<2x8xf32>
      %33 = vector.shape_cast %32 : vector<2x8xf32> to vector<2x8x1xf32>
      %cst_13 = arith.constant dense<0.000000e+00> : vector<8x1xf32>
      %34 = vector.multi_reduction <add>, %33, %cst_13 [0] : vector<2x8x1xf32> to vector<8x1xf32>
      %35 = vector.shape_cast %34 : vector<8x1xf32> to vector<1x8x1xf32>
      %36 = vector.broadcast %35 : vector<1x8x1xf32> to vector<2x8x8xf32>
      %37 = arith.divf %31, %36 : vector<2x8x8xf32>
      %c0_14 = arith.constant 0 : index
      %c0_15 = arith.constant 0 : index
      %c0_16 = arith.constant 0 : index
      %38 = vector.load %arg4[%c0_14, %c0_15, %c0_16] : memref<2x8x8xf32, #tpu.memory_space<vmem>>, vector<2x8x8xf32>
      tpu.vector_store %arg4[%c0_14, %c0_15, %c0_16], %37 {strides = array<i32>} : memref<2x8x8xf32, #tpu.memory_space<vmem>>, vector<2x8x8xf32>,
    } else {
    }
    return
  }
  func.func @transform_0(%arg0: i32, %arg1: i32) -> (i32, i32) {
    %c0_i32 = arith.constant 0 : i32
    %c0_i32_0 = arith.constant 0 : i32
    return %arg0, %c0_i32 : i32, i32
  }
  func.func @transform_1(%arg0: i32, %arg1: i32) -> (i32, i32, i32) {
    %c0_i32 = arith.constant 0 : i32
    %c0_i32_0 = arith.constant 0 : i32
    return %arg1, %arg0, %c0_i32 : i32, i32, i32
  }
  func.func @transform_2(%arg0: i32, %arg1: i32) -> (i32, i32, i32) {
    %c0_i32 = arith.constant 0 : i32
    %c0_i32_0 = arith.constant 0 : i32
    %c0_i32_1 = arith.constant 0 : i32
    return %c0_i32, %arg0, %c0_i32_0 : i32, i32, i32
  }
}

</mosaic_0001>

<llo_original>
// kernel: tpu_custom_call.1
$region0: #{tpu_custom_call.1}
  #allocation0 [shape = 'u32[]', space=smem, size = 0x4, offset = 0x4, fixed_abs, tag = 'smem constant byte address 0x4 - core index']
  #allocation1 [shape = 'u32[144,128]{1,0:T(1,128)}', space=vmem, size = 0x12000, scoped, tag = 'internal scratch']
  %s0 = inlined_call_operand.hbm [shape: f32[8,32], index: 0, kind: input, shape index: {}]
  %s1 = inlined_call_operand.hbm [shape: bf16[16,8,32], index: 1, kind: input, shape index: {}]
  %s2 = inlined_call_operand.hbm [shape: f32[2,8,8], index: 2, kind: output, shape index: {}]
  %s3 = sld [smem:[#allocation0]]
  $region53: #{tpu_custom_call.1} parent=0
    _
  %s5 = ssub.s32 1, %s3
  %s6 = scalar_select 0, %s5, %s3
  $region1: #{tpu_custom_call.1} parent=0
    #allocation2 [shape = 'u8[4096]{0}', space=vmem, size = 0x1000, scoped, tag = 'input window, operand 0, single buffered']
    #allocation3 [shape = 's32[2]{0}', space=sflag, size = 0x8, scoped, tag = 'scoped memory for tpu_custom_call.1']
    #allocation4 [shape = 's32[2]{0}', space=sflag, size = 0x8, scoped, tag = 'scoped memory for tpu_custom_call.1']
    #allocation5 [shape = 'u8[32768]{0}', space=vmem, size = 0x8000, scoped, tag = 'input window, operand 1']
    #allocation6 [shape = 's32[2]{0}', space=sflag, size = 0x8, scoped, tag = 'scoped memory for tpu_custom_call.1']
    #allocation7 [shape = 'u8[8192]{0}', space=vmem, size = 0x2000, scoped, tag = 'output window, operand 0, single buffered']
    %7 = vsyncpa [#allocation3], 0
    %8 = vsyncpa [#allocation6], 0
    %s9 = scalar_lea.sflag [#allocation6], 1
    %10 = vsyncpa %s9, 0
    %11 = vsyncpa [#allocation4], 0
    loop: start=0, step=1, limit=4
    $region2: #{tpu_custom_call.1} parent=1 // loop_pre_header
      _
    $region3: #{tpu_custom_call.1} parent=1 // loop_header
      %s13 = sphi 0, %s17
      %p14 = scmp.ge.s32.totalorder %s13, 4
      %s20 = sphi 0, %s32
      %s21 = sphi 0, %s28
      %s22 = sphi 0, %s20
      %s23 = sphi 0, %s21
      %s24 = sphi 0, %s22
      %s25 = sphi 0, %s23
      %s35 = sphi 0, %s37
      %s38 = sphi 0, %s35
      %s39 = sphi 0, %s38
      %s55 = sphi 0, %s39
      %s63 = sphi 0, %s65
      %s66 = sphi 0, %s63
      %s67 = sphi 0, %s66
      %s83 = sphi 0, %s67
      %s89 = sphi 0, %s91
      %s92 = sphi 0, %s89
      %s93 = sphi 0, %s92
      %s109 = sphi 0, %s93
    $region4: #{tpu_custom_call.1} parent=1 // loop_header_branch
      %16 = sbr.rel (%p14) target = $region8
    $region5: #{tpu_custom_call.1} parent=1 // loop_body
      %s18 = ssub.s32 %s13, 1
      %s19 = ssub.s32 %s13, 2
      %s26 = sadd.s32 1, %s21
      %p27 = scmp.ge.s32.totalorder %s26, 2
      %s28 = scalar_select %p27, 0, %s26
      %s29 = sadd.s32 1, %s20
      %s30 = scalar_select %p27, %s29, %s20
      %p31 = scmp.ge.s32.totalorder %s30, 1
      %s32 = scalar_select %p31, 0, %s30
      %s33 = ssub.s32 %s20, %s32
      %p34 = scmp.eq.s32.totalorder %s33, 0
      %s36 = sadd.s32 %s35, 1
      %s37 = scalar_select %p34, %s35, %s36
      %p40 = pneg %p34
      %p41 = scmp.eq.s32.totalorder %s13, 1
      %p42 = por %p40, %p41
      %p43 = scmp.ne.s32.totalorder %s35, %s38
      %p44 = scmp.eq.s32.totalorder %s13, 0
      %p45 = por %p43, %p44
      %p46 = scmp.ne.s32.totalorder %s35, %s38
      %p47 = scmp.eq.s32.totalorder %s18, 1
      %p48 = por %p46, %p47
      %p49 = scmp.ne.s32.totalorder %s38, %s39
      %p50 = scmp.eq.s32.totalorder %s18, 0
      %p51 = por %p49, %p50
      %p52 = scmp.ne.s32.totalorder %s38, %s39
      %p53 = scmp.eq.s32.totalorder %s19, 1
      %p54 = por %p52, %p53
      %p56 = scmp.ne.s32.totalorder %s39, %s55
      %p57 = scmp.eq.s32.totalorder %s19, 0
      %p58 = por %p56, %p57
      %s59 = ssub.s32 %s21, %s28
      %s60 = ssub.s32 %s20, %s32
      %s61 = sor.u32 %s59, %s60
      %p62 = scmp.eq.s32.totalorder %s61, 0
      %s64 = sadd.s32 %s63, 1
      %s65 = scalar_select %p62, %s63, %s64
      %p68 = pneg %p62
      %p69 = scmp.eq.s32.totalorder %s13, 1
      %p70 = por %p68, %p69
      %p71 = scmp.ne.s32.totalorder %s63, %s66
      %p72 = scmp.eq.s32.totalorder %s13, 0
      %p73 = por %p71, %p72
      %p74 = scmp.ne.s32.totalorder %s63, %s66
      %p75 = scmp.eq.s32.totalorder %s18, 1
      %p76 = por %p74, %p75
      %p77 = scmp.ne.s32.totalorder %s66, %s67
      %p78 = scmp.eq.s32.totalorder %s18, 0
      %p79 = por %p77, %p78
      %p80 = scmp.ne.s32.totalorder %s66, %s67
      %p81 = scmp.eq.s32.totalorder %s19, 1
      %p82 = por %p80, %p81
      %p84 = scmp.ne.s32.totalorder %s67, %s83
      %p85 = scmp.eq.s32.totalorder %s19, 0
      %p86 = por %p84, %p85
      %s87 = ssub.s32 %s20, %s32
      %p88 = scmp.eq.s32.totalorder %s87, 0
      %s90 = sadd.s32 %s89, 1
      %s91 = scalar_select %p88, %s89, %s90
      %p94 = pneg %p88
      %p95 = scmp.eq.s32.totalorder %s13, 1
      %p96 = por %p94, %p95
      %p97 = scmp.ne.s32.totalorder %s89, %s92
      %p98 = scmp.eq.s32.totalorder %s13, 0
      %p99 = por %p97, %p98
      %p100 = scmp.ne.s32.totalorder %s89, %s92
      %p101 = scmp.eq.s32.totalorder %s18, 1
      %p102 = por %p100, %p101
      %p103 = scmp.ne.s32.totalorder %s92, %s93
      %p104 = scmp.eq.s32.totalorder %s18, 0
      %p105 = por %p103, %p104
      %p106 = scmp.ne.s32.totalorder %s92, %s93
      %p107 = scmp.eq.s32.totalorder %s19, 1
      %p108 = por %p106, %p107
      %p110 = scmp.ne.s32.totalorder %s93, %s109
      %p111 = scmp.eq.s32.totalorder %s19, 0
      %p112 = por %p110, %p111
      %p113 = scmp.le.s32.totalorder 1, %s13
      %p114 = scmp.lt.s32.totalorder %s13, 3
      %p115 = pnand %p113, %p114
      %p116 = pneg %p115
      // Predicated region
      $region9: #{tpu_custom_call.1} parent=5 // pred_check
        _
      $region10: #{tpu_custom_call.1} parent=5 // pred_check_branch
        %118 = sbr.rel (%p115) target = $region12
      $region11: #{tpu_custom_call.1} parent=5 // pred_region
        %s119 = ssub.s32 %s13, 1
        // Predicated region
        $region13: #{tpu_custom_call.1} parent=11 // pred_check
          %p120 = pneg %p51
        $region14: #{tpu_custom_call.1} parent=11 // pred_check_branch
          %122 = sbr.rel (%p120) target = $region16
        $region15: #{tpu_custom_call.1} parent=11 // pred_region
          %s124 = ssub.s32 128, 128
          %125 = vsyncadd [#allocation3], %s124
          %s126 = smul.addr %s22, 128
          %s127 = scalar_lea.hbm %s0, %s126
          %s129 = sshll.u32 [#allocation2], 4
          %s130 = int_to_ptr.vmem [resolvable:$true] %s129
          %132 = dma.hbm_to_vmem [thread:$0]  %s127, 128, %s130, [#allocation3]
        $region16: #{tpu_custom_call.1} parent=11 // pred_fallthru
          _
      $region12: #{tpu_custom_call.1} parent=5 // pred_fallthru
        _
      %p133 = scmp.lt.s32.totalorder %s13, 2
      // Predicated region
      $region17: #{tpu_custom_call.1} parent=5 // pred_check
        %p134 = pneg %p133
      $region18: #{tpu_custom_call.1} parent=5 // pred_check_branch
        %136 = sbr.rel (%p134) target = $region20
      $region19: #{tpu_custom_call.1} parent=5 // pred_region
        // Predicated region
        $region21: #{tpu_custom_call.1} parent=19 // pred_check
          %p137 = pneg %p73
        $region22: #{tpu_custom_call.1} parent=19 // pred_check_branch
          %139 = sbr.rel (%p137) target = $region24
        $region23: #{tpu_custom_call.1} parent=19 // pred_region
          %s140 = sand.u32 %s63, 1
          %s141 = scalar_lea.sflag [#allocation6], %s140
          %s142 = sand.u32 %s63, 1
          %s143 = smul.addr %s142, 32
          %s144 = scalar_lea.vmem [#allocation5], %s143
          %s145 = smul.u32 8, %s21
          %s147 = ssub.s32 512, 512
          %148 = vsyncadd %s141, %s147
          %s149 = sadd.s32 %s20, %s145
          %s150 = smul.addr %s149, 64
          %s151 = scalar_lea.hbm %s1, %s150
          %s152 = sshll.u32 %s144, 4
          %s153 = int_to_ptr.vmem [resolvable:$true] %s152
          %158 = dma.hbm_to_vmem [thread:$0]  %s151, 512, %s153, %s141, 64, 64, 4
        $region24: #{tpu_custom_call.1} parent=19 // pred_fallthru
          _
      $region20: #{tpu_custom_call.1} parent=5 // pred_fallthru
        _
      %p159 = scmp.le.s32.totalorder 1, %s13
      %p160 = scmp.lt.s32.totalorder %s13, 3
      %p161 = pnand %p159, %p160
      %p162 = pneg %p161
      // Predicated region
      $region25: #{tpu_custom_call.1} parent=5 // pred_check
        _
      $region26: #{tpu_custom_call.1} parent=5 // pred_check_branch
        %164 = sbr.rel (%p161) target = $region28
      $region27: #{tpu_custom_call.1} parent=5 // pred_region
        %s165 = ssub.s32 %s13, 1
        // Predicated region
        $region29: #{tpu_custom_call.1} parent=27 // pred_check
          %p166 = pneg %p51
        $region30: #{tpu_custom_call.1} parent=27 // pred_check_branch
          %168 = sbr.rel (%p166) target = $region32
        $region31: #{tpu_custom_call.1} parent=27 // pred_region
          %169 = dma.done [#allocation3], 128
        $region32: #{tpu_custom_call.1} parent=27 // pred_fallthru
          _
        %s170 = sand.u32 %s66, 1
        %s171 = scalar_lea.sflag [#allocation6], %s170
        %s172 = sand.u32 %s66, 1
        %s173 = smul.addr %s172, 32
        %s174 = scalar_lea.vmem [#allocation5], %s173
        // Predicated region
        $region33: #{tpu_custom_call.1} parent=27 // pred_check
          %p175 = pneg %p79
        $region34: #{tpu_custom_call.1} parent=27 // pred_check_branch
          %177 = sbr.rel (%p175) target = $region36
        $region35: #{tpu_custom_call.1} parent=27 // pred_region
          %178 = dma.done %s171, 512
        $region36: #{tpu_custom_call.1} parent=27 // pred_fallthru
          _
        %p179 = pneg %p51
        %p180 = pneg %p48
        %s181 = sand.u32 %s66, 1
        %s182 = scalar_lea.sflag [#allocation6], %s181
        %s183 = sand.u32 %s66, 1
        %s184 = smul.addr %s183, 32
        %s185 = scalar_lea.vmem [#allocation5], %s184
        %p186 = pneg %p79
        %p187 = pneg %p76
        %p188 = pneg %p105
        %p189 = pneg %p102
        %s190 = smul.u32 8, %s23
        %v191 = vld [vmem:[%s174] sm:$0xf]
        %v192 = vld [vmem:[%s174 + $0x4] sm:$0xf]
        %v193 = vld [vmem:[%s174 + $0x8] sm:$0xf]
        %v194 = vld [vmem:[%s174 + $0xc] sm:$0xf]
        %v195 = vld [vmem:[%s174 + $0x10] sm:$0xf]
        %v196 = vld [vmem:[%s174 + $0x14] sm:$0xf]
        %v197 = vld [vmem:[%s174 + $0x18] sm:$0xf]
        %v198 = vld [vmem:[%s174 + $0x1c] sm:$0xf]
        %v199 = vld [vmem:[#allocation2] sm:$0xff]
        %v200 = vunpack.c.l.bf16 %v191
        %v201 = vunpack.c.l.bf16 %v192
        %v202 = vunpack.c.l.bf16 %v193
        %v203 = vunpack.c.l.bf16 %v194
        %v204 = vunpack.c.l.bf16 %v195
        %v205 = vunpack.c.l.bf16 %v196
        %v206 = vunpack.c.l.bf16 %v197
        %v207 = vunpack.c.l.bf16 %v198
        %v208 = vmul.f32 %v200, %v199
        %v209 = vmul.f32 %v201, %v199
        %v210 = vmul.f32 %v202, %v199
        %v211 = vmul.f32 %v203, %v199
        %v212 = vmul.f32 %v204, %v199
        %v213 = vmul.f32 %v205, %v199
        %v214 = vmul.f32 %v206, %v199
        %v215 = vmul.f32 %v207, %v199
        %vm216 = vcmask 261120
        %v217 = vsel %vm216, %v208, 0.0
        %218 = vadd.xlane.f32.xlu0 %v217
        %v219 = vpop.xlane.xlu0 %218
        %v220 = vsel %vm216, %v209, 0.0
        %221 = vadd.xlane.f32.xlu0 %v220
        %v222 = vpop.xlane.xlu0 %221
        %v223 = vsel %vm216, %v210, 0.0
        %224 = vadd.xlane.f32.xlu0 %v223
        %v225 = vpop.xlane.xlu0 %224
        %v226 = vsel %vm216, %v211, 0.0
        %227 = vadd.xlane.f32.xlu0 %v226
        %v228 = vpop.xlane.xlu0 %227
        %v229 = vsel %vm216, %v212, 0.0
        %230 = vadd.xlane.f32.xlu0 %v229
        %v231 = vpop.xlane.xlu0 %230
        %v232 = vsel %vm216, %v213, 0.0
        %233 = vadd.xlane.f32.xlu0 %v232
        %v234 = vpop.xlane.xlu0 %233
        %v235 = vsel %vm216, %v214, 0.0
        %236 = vadd.xlane.f32.xlu0 %v235
        %v237 = vpop.xlane.xlu0 %236
        %v238 = vsel %vm216, %v215, 0.0
        %239 = vadd.xlane.f32.xlu0 %v238
        %v240 = vpop.xlane.xlu0 %239
        %v249 = vlaneseq
        %v250 = vand.u32 %v249, 127
        %v251 = vlaneseq
        %v252 = vshrl.u32 %v251, 7
        %v253 = vsub.s32 %v250, %v252
        %v254 = vrot.slane %v219, %v253
        %v255 = vlaneseq
        %v256 = vshrl.u32 %v255, 7
        %v257 = vsub.s32 %v250, %v256
        %v258 = vrot.slane %v222, %v257
        %v259 = vlaneseq
        %v260 = vshrl.u32 %v259, 7
        %v261 = vsub.s32 %v250, %v260
        %v262 = vrot.slane %v225, %v261
        %v263 = vlaneseq
        %v264 = vshrl.u32 %v263, 7
        %v265 = vsub.s32 %v250, %v264
        %v266 = vrot.slane %v228, %v265
        %v267 = vlaneseq
        %v268 = vshrl.u32 %v267, 7
        %v269 = vsub.s32 %v250, %v268
        %v270 = vrot.slane %v231, %v269
        %v271 = vlaneseq
        %v272 = vshrl.u32 %v271, 7
        %v273 = vsub.s32 %v250, %v272
        %v274 = vrot.slane %v234, %v273
        %v275 = vlaneseq
        %v276 = vshrl.u32 %v275, 7
        %v277 = vsub.s32 %v250, %v276
        %v278 = vrot.slane %v237, %v277
        %v279 = vlaneseq
        %v280 = vshrl.u32 %v279, 7
        %v281 = vsub.s32 %v250, %v280
        %v282 = vrot.slane %v240, %v281
        %vm283 = vcmask 1041409
        %v284 = vsel %vm283, %v258, %v254
        %vm285 = vcmask 1042434
        %v286 = vsel %vm285, %v262, %v284
        %vm287 = vcmask 1043459
        %v288 = vsel %vm287, %v266, %v286
        %vm289 = vcmask 1044484
        %v290 = vsel %vm289, %v270, %v288
        %vm291 = vcmask 1045509
        %v292 = vsel %vm291, %v274, %v290
        %vm293 = vcmask 1046534
        %v294 = vsel %vm293, %v278, %v292
        %vm295 = vcmask 1047559
        %v296 = vsel %vm295, %v282, %v294
        %298 = vxpose.xlu0.b32.start [1/16] %v296, 128
        %299 = vxpose.xlu0.b32.cont [2/16] 0.0, 128
        %300 = vxpose.xlu0.b32.cont [3/16] 0.0, 128
        %301 = vxpose.xlu0.b32.cont [4/16] 0.0, 128
        %302 = vxpose.xlu0.b32.cont [5/16] 0.0, 128
        %303 = vxpose.xlu0.b32.cont [6/16] 0.0, 128
        %304 = vxpose.xlu0.b32.cont [7/16] 0.0, 128
        %305 = vxpose.xlu0.b32.cont [8/16] 0.0, 128
        %306 = vxpose.xlu0.b32.cont [9/16] 0.0, 128
        %307 = vxpose.xlu0.b32.cont [10/16] 0.0, 128
        %308 = vxpose.xlu0.b32.cont [11/16] 0.0, 128
        %309 = vxpose.xlu0.b32.cont [12/16] 0.0, 128
        %310 = vxpose.xlu0.b32.cont [13/16] 0.0, 128
        %311 = vxpose.xlu0.b32.cont [14/16] 0.0, 128
        %312 = vxpose.xlu0.b32.cont [15/16] 0.0, 128
        %313 = vxpose.xlu0.b32.end [16/16] 0.0, 128
        %v314 = vpop.trf.xlu0
        %v315 = vpop.trf.xlu0
        %v316 = vpop.trf.xlu0
        %v317 = vpop.trf.xlu0
        %v318 = vpop.trf.xlu0
        %v319 = vpop.trf.xlu0
        %v320 = vpop.trf.xlu0
        %v321 = vpop.trf.xlu0
        %v322 = vpop.trf.xlu0
        %v323 = vpop.trf.xlu0
        %v324 = vpop.trf.xlu0
        %v325 = vpop.trf.xlu0
        %v326 = vpop.trf.xlu0
        %v327 = vpop.trf.xlu0
        %v328 = vpop.trf.xlu0
        %v329 = vpop.trf.xlu0
        %s330 = smul.u32 %s23, 8
        %s331 = scalar_lea.vmem [#allocation7], %s330
        %vm332 = vcmask 64512
        %333 = vst.msk [vmem:[%s331] sm:$0xff] %vm332, %v314
        %p334 = scmp.eq.s32.totalorder %s23, 1
        // Predicated region
        $region37: #{tpu_custom_call.1} parent=27 // pred_check
          %p335 = pneg %p334
        $region38: #{tpu_custom_call.1} parent=27 // pred_check_branch
          %337 = sbr.rel (%p335) target = $region40
        $region39: #{tpu_custom_call.1} parent=27 // pred_region
          %v338 = vld [vmem:[#allocation7] sm:$0xff]
          %v339 = vld [vmem:[#allocation7 + $0x8] sm:$0xff]
          %v340 = vadd.s32 %v250, 8
          %vm341 = vcmp.lt.s32.totalorder %v250, 12
          %vm342 = vcmp.lt.s32.totalorder %v340, 12
          %v343 = vsel %vm341, %v338, -inf
          %v344 = vsel %vm342, %v339, -inf
          %v345 = vsel %vm332, %v343, -inf
          %346 = vmax.xlane.f32.xlu0 %v345
          %v347 = vpop.xlane.xlu0 %346
          %v348 = vsel %vm332, %v344, -inf
          %349 = vmax.xlane.f32.xlu0 %v348
          %v350 = vpop.xlane.xlu0 %349
          %v351 = vmax.f32 %v347, %v350
          %v352 = vsub.f32 %v343, %v351
          %v353 = vsub.f32 %v344, %v351
          %v354 = vmul.f32 %v352, 1.442695
          %v355 = vpow.pop %v354
          %v356 = vmul.f32 %v353, 1.442695
          %v357 = vpow.pop %v356
          %v358 = vsel %vm332, %v355, 0.0
          %359 = vadd.xlane.f32.xlu0 %v358
          %v360 = vpop.xlane.xlu0 %359
          %v361 = vsel %vm332, %v357, 0.0
          %362 = vadd.xlane.f32.xlu0 %v361
          %v363 = vpop.xlane.xlu0 %362
          %v364 = vadd.f32 %v360, %v363
          %v365 = vrcp.pop %v364
          %v366 = vmul.f32 %v355, %v365
          %v367 = vmul.f32 %v357, %v365
          %368 = vst.msk [vmem:[#allocation7] sm:$0xff] %vm332, %v366
          %369 = vst.msk [vmem:[#allocation7 + $0x8] sm:$0xff] %vm332, %v367
        $region40: #{tpu_custom_call.1} parent=27 // pred_fallthru
          _
        // Predicated region
        $region41: #{tpu_custom_call.1} parent=27 // pred_check
          %p370 = pneg %p102
        $region42: #{tpu_custom_call.1} parent=27 // pred_check_branch
          %372 = sbr.rel (%p370) target = $region44
        $region43: #{tpu_custom_call.1} parent=27 // pred_region
          %s374 = ssub.s32 256, 256
          %375 = vsyncadd [#allocation4], %s374
          %s376 = smul.addr %s22, 128
          %s377 = scalar_lea.hbm %s2, %s376
          %s378 = sshll.u32 [#allocation7], 4
          %s379 = int_to_ptr.vmem [resolvable:$true] %s378
          %384 = dma.vmem_to_hbm [thread:$0]  %s379, 256, %s377, [#allocation4], 128, 128, 8
        $region44: #{tpu_custom_call.1} parent=27 // pred_fallthru
          _
        // Predicated region
        $region45: #{tpu_custom_call.1} parent=27 // pred_check
          %p385 = pneg %p102
        $region46: #{tpu_custom_call.1} parent=27 // pred_check_branch
          %387 = sbr.rel (%p385) target = $region48
        $region47: #{tpu_custom_call.1} parent=27 // pred_region
          %388 = dma.done [#allocation4], 256
        $region48: #{tpu_custom_call.1} parent=27 // pred_fallthru
          _
      $region28: #{tpu_custom_call.1} parent=5 // pred_fallthru
        _
      %p389 = scmp.le.s32.totalorder 2, %s13
      // Predicated region
      $region49: #{tpu_custom_call.1} parent=5 // pred_check
        %p390 = pneg %p389
      $region50: #{tpu_custom_call.1} parent=5 // pred_check_branch
        %392 = sbr.rel (%p390) target = $region52
      $region51: #{tpu_custom_call.1} parent=5 // pred_region
        %s393 = ssub.s32 %s13, 2
      $region52: #{tpu_custom_call.1} parent=5 // pred_fallthru
        _
    $region6: #{tpu_custom_call.1} parent=1 // loop_footer
      %s17 = sadd.s32 1, %s13
    $region7: #{tpu_custom_call.1} parent=1 // loop_footer_branch
      %12 = sbr.rel target = $region3
    $region8: #{tpu_custom_call.1} parent=1 // loop_exit
      _
    %394 = vsyncpa [#allocation3], 1
    %s395 = scalar_lea.sflag [#allocation3], 1
    %396 = vsyncpa %s395, 1
    %397 = vsyncpa [#allocation6], 1
    %s398 = scalar_lea.sflag [#allocation6], 1
    %399 = vsyncpa %s398, 1
    %400 = vsyncpa [#allocation4], 1
    %s401 = scalar_lea.sflag [#allocation4], 1
    %402 = vsyncpa %s401, 1

</llo_original>
